<compile_context>
chip_gen: v5e
topology: v5e:2x2
jax: 0.10.0
libtpu: 0.0.40
codegen_flags: <defaults>
</compile_context>

<pallas_src>
import math
from math import inf

import jax
import jax.numpy as jnp
from jax.experimental import pallas as pl
from jax.experimental.pallas import tpu as pltpu


# ----------------------------- Pallas LSTM kernel -----------------------------

def _level_lstm_kernel(tok_ref, h0_ref, c0_ref, wih_ref, whh_ref, b_ref,
                       hn_ref, cn_ref):
    """Batched single-layer LSTM recurrence for all N tree nodes of one level.

    tok_ref : (N, S) int32 in SMEM  -- token ids (arg_hot is one-hot)
    h0_ref  : (N, H) f32  VMEM      -- initial hidden (concat of child halves)
    c0_ref  : (N, H) f32  VMEM
    wih_ref : (I, 4H) f32 VMEM      -- W_ih^T, rows gathered by token id
    whh_ref : (H, 4H) f32 VMEM      -- W_hh^T
    b_ref   : (1, 4H) f32 VMEM      -- b_ih + b_hh
    hn_ref/cn_ref : (N, H) f32      -- final hidden / cell per node
    """
    N, S = tok_ref.shape
    H = h0_ref.shape[1]

    whh = whh_ref[...]
    b = b_ref[...]
    h = h0_ref[...]
    c = c0_ref[...]

    # Fully unrolled recurrence: the loop is a serial latency chain of tiny
    # matmuls, so static unrolling gives the scheduler full visibility.
    for t in range(S):
        # Input projection as a table lookup (arg_hot is one-hot):
        #   x_t @ W_ih^T == W_ih^T[token_id]  -> dynamic sublane slice per node.
        rows = [wih_ref[pl.ds(tok_ref[n, t], 1), :] for n in range(N)]  # (1,4H) each
        x_proj = jnp.concatenate(rows, axis=0)                           # (N,4H)

        gates = x_proj + b + jnp.dot(h, whh, preferred_element_type=jnp.float32)
        i_g = jax.nn.sigmoid(gates[:, 0 * H:1 * H])
        f_g = jax.nn.sigmoid(gates[:, 1 * H:2 * H])
        g_g = jnp.tanh(gates[:, 2 * H:3 * H])
        o_g = jax.nn.sigmoid(gates[:, 3 * H:4 * H])
        c = f_g * c + i_g * g_g
        h = o_g * jnp.tanh(c)

    hn_ref[...] = h
    cn_ref[...] = c


def lstm_level_pallas(tok_ids, h0, c0, wih_t, whh_t, bias):
    """One pallas_call for all N nodes of a tree level (weights DMA'd once)."""
    N, _ = tok_ids.shape
    H = h0.shape[1]
    return pl.pallas_call(
        _level_lstm_kernel,
        out_shape=(
            jax.ShapeDtypeStruct((N, H), jnp.float32),
            jax.ShapeDtypeStruct((N, H), jnp.float32),
        ),
        in_specs=[
            pl.BlockSpec(memory_space=pltpu.MemorySpace.SMEM),   # token ids
            pl.BlockSpec(memory_space=pltpu.MemorySpace.VMEM),   # h0
            pl.BlockSpec(memory_space=pltpu.MemorySpace.VMEM),   # c0
            pl.BlockSpec(memory_space=pltpu.MemorySpace.VMEM),   # W_ih^T
            pl.BlockSpec(memory_space=pltpu.MemorySpace.VMEM),   # W_hh^T
            pl.BlockSpec(memory_space=pltpu.MemorySpace.VMEM),   # bias
        ],
        out_specs=(
            pl.BlockSpec(memory_space=pltpu.MemorySpace.VMEM),
            pl.BlockSpec(memory_space=pltpu.MemorySpace.VMEM),
        ),
    )(tok_ids, h0, c0, wih_t, whh_t, bias)


# ----------------------------- Tree node + module -----------------------------

class ExprNode:
    """Minimal stand-in for the original ExprNode."""

    def __init__(self, arg_hot, a=None, b=None):
        self.arg_hot = arg_hot      # (seq_len, input_size) one-hot
        self.a = a
        self.b = b
        self.hidden = None          # (1, hidden_size)
        self.cell = None            # (1, hidden_size)
        self.parent = None

    def ensure_parenthood(self):
        if self.a is not None:
            self.a.parent = self
        if self.b is not None:
            self.b.parent = self


class BinaryTreeLSTM:
    """JAX/Pallas re-implementation of the PyTorch BinaryTreeLSTM forward pass.

    Semantics match the original module; the only structural change is that
    independent nodes (all nodes of the same tree level) are processed by a
    single batched Pallas kernel instead of one nn.LSTM call each.
    """

    def __init__(self, input_size: int, hidden_size: int, key):
        self.input_size = input_size
        self.hidden_size = hidden_size
        self.left_size = hidden_size // 2
        self.right_size = hidden_size - self.left_size

        # Deterministic init matching nn.LSTM's uniform(-1/sqrt(H), 1/sqrt(H)).
        k = 1.0 / math.sqrt(hidden_size)
        k_wih, k_whh, k_bih, k_bhh = jax.random.split(key, 4)
        w_ih = jax.random.uniform(k_wih, (4 * hidden_size, input_size),
                                  jnp.float32, -k, k)
        w_hh = jax.random.uniform(k_whh, (4 * hidden_size, hidden_size),
                                  jnp.float32, -k, k)
        b_ih = jax.random.uniform(k_bih, (4 * hidden_size,), jnp.float32, -k, k)
        b_hh = jax.random.uniform(k_bhh, (4 * hidden_size,), jnp.float32, -k, k)

        # Pre-transpose for the kernel; fold the two biases together.
        self.wih_t = jnp.transpose(w_ih)                  # (I, 4H)
        self.whh_t = jnp.transpose(w_hh)                  # (H, 4H)
        self.bias = (b_ih + b_hh)[None, :]                # (1, 4H)

        # jit the per-level glue (one-hot -> token ids, child-half concat) so it
        # fuses around the single pallas_call per level (one dispatch per level).
        self._level_fn = jax.jit(self._run_level)

    # --- jitted per-level computation -----------------------------------------
    def _run_level(self, arg_hot_b, a_h, a_c, b_h, b_c, wih_t, whh_t, bias):
        # arg_hot is one-hot by construction, so the input projection is a row
        # gather of W_ih^T — the kernel only needs the integer token ids.
        # TODO(synk): for general (non-one-hot) dense inputs, fall back to an
        #             x @ W_ih^T MXU matmul path inside the kernel.
        tok = jnp.argmax(arg_hot_b, axis=-1).astype(jnp.int32)          # (N, S)
        h0 = jnp.concatenate(
            [a_h[:, :self.left_size], b_h[:, :self.right_size]], axis=-1)
        c0 = jnp.concatenate(
            [a_c[:, :self.left_size], b_c[:, :self.right_size]], axis=-1)
        return lstm_level_pallas(tok, h0, c0, wih_t, whh_t, bias)

    # --- tree scheduling -------------------------------------------------------
    def _collect_levels(self, node, depth, levels):
        """Post-order walk respecting `depth`; groups nodes by height so every
        node's children are processed in an earlier (lower) level."""
        if node is None or depth < 0:
            return -1
        la = self._collect_levels(node.a, depth - 1, levels)
        lb = self._collect_levels(node.b, depth - 1, levels)
        node.ensure_parenthood()
        lvl = max(la, lb) + 1
        levels.setdefault(lvl, []).append(node)
        return lvl

    def _process_group(self, nodes):
        H = self.hidden_size
        zeros = jnp.zeros((1, H), jnp.float32)
        x = jnp.stack([n.arg_hot for n in nodes], axis=0)               # (N, S, I)
        a_h = jnp.concatenate(
            [n.a.hidden if n.a is not None else zeros for n in nodes], axis=0)
        a_c = jnp.concatenate(
            [n.a.cell if n.a is not None else zeros for n in nodes], axis=0)
        b_h = jnp.concatenate(
            [n.b.hidden if n.b is not None else zeros for n in nodes], axis=0)
        b_c = jnp.concatenate(
            [n.b.cell if n.b is not None else zeros for n in nodes], axis=0)

        hn, cn = self._level_fn(x, a_h, a_c, b_h, b_c,
                                self.wih_t, self.whh_t, self.bias)
        for i, n in enumerate(nodes):
            n.hidden = hn[i:i + 1]                                       # (1, H)
            n.cell = cn[i:i + 1]                                         # (1, H)

    def __call__(self, node: ExprNode, depth=inf) -> ExprNode:
        if node is None or depth < 0:
            return node
        levels = {}
        self._collect_levels(node, depth, levels)
        for lvl in sorted(levels):
            # Batch nodes with identical sequence length together.
            by_len = {}
            for n in levels[lvl]:
                by_len.setdefault(int(n.arg_hot.shape[0]), []).append(n)
            for group in by_len.values():
                self._process_group(group)
        return node


# ----------------------------------- main --------------------------------------

if __name__ == "__main__":
    INPUT_SIZE = 8
    HIDDEN_SIZE = 32
    SEQ_LEN = 4

    key = jax.random.PRNGKey(0)
    key, k_params, *k_nodes = jax.random.split(key, 2 + 7)

    model = BinaryTreeLSTM(INPUT_SIZE, HIDDEN_SIZE, k_params)

    def make_arg_hot(k):
        # One-hot token sequence, deterministic.
        idx = jax.random.randint(k, (SEQ_LEN,), 0, INPUT_SIZE)
        return jax.nn.one_hot(idx, INPUT_SIZE, dtype=jnp.float32)

    # 7-node binary tree (3 levels: 4 leaves, 2 internal, 1 root) to exercise
    # per-level batching.
    leaves = [ExprNode(make_arg_hot(k)) for k in k_nodes[:4]]
    mid_l = ExprNode(make_arg_hot(k_nodes[4]), a=leaves[0], b=leaves[1])
    mid_r = ExprNode(make_arg_hot(k_nodes[5]), a=leaves[2], b=leaves[3])
    root = ExprNode(make_arg_hot(k_nodes[6]), a=mid_l, b=mid_r)

    out = model(root)

    jax.block_until_ready(out.hidden)
    jax.block_until_ready(out.cell)
    assert out.hidden.shape == (1, HIDDEN_SIZE)
    assert out.cell.shape == (1, HIDDEN_SIZE)
    for n in leaves + [mid_l, mid_r, root]:
        assert n.hidden is not None and n.cell is not None

    print("KERNEL_OK")
</pallas_src>

<mosaic_0001>
module attributes {stable_mosaic.version = 11 : i64} {
  func.func @_level_lstm_kernel(%arg0: memref<4x4xi32, #tpu.memory_space<smem>>, %arg1: memref<4x32xf32, #tpu.memory_space<vmem>>, %arg2: memref<4x32xf32, #tpu.memory_space<vmem>>, %arg3: memref<8x128xf32, #tpu.memory_space<vmem>>, %arg4: memref<32x128xf32, #tpu.memory_space<vmem>>, %arg5: memref<1x128xf32, #tpu.memory_space<vmem>>, %arg6: memref<4x32xf32, #tpu.memory_space<vmem>>, %arg7: memref<4x32xf32, #tpu.memory_space<vmem>>) attributes {dimension_semantics = [], scalar_prefetch = 0 : i64, scratch_operands = 0 : i64, tpu.core_type = #tpu.core_type<tc>} {
    %c0 = arith.constant 0 : index
    %c0_0 = arith.constant 0 : index
    %0 = vector.load %arg4[%c0, %c0_0] : memref<32x128xf32, #tpu.memory_space<vmem>>, vector<32x128xf32>
    %c0_1 = arith.constant 0 : index
    %c0_2 = arith.constant 0 : index
    %1 = vector.load %arg5[%c0_1, %c0_2] : memref<1x128xf32, #tpu.memory_space<vmem>>, vector<1x128xf32>
    %c0_3 = arith.constant 0 : index
    %c0_4 = arith.constant 0 : index
    %2 = vector.load %arg1[%c0_3, %c0_4] : memref<4x32xf32, #tpu.memory_space<vmem>>, vector<4x32xf32>
    %c0_5 = arith.constant 0 : index
    %c0_6 = arith.constant 0 : index
    %3 = vector.load %arg2[%c0_5, %c0_6] : memref<4x32xf32, #tpu.memory_space<vmem>>, vector<4x32xf32>
    %c0_7 = arith.constant 0 : index
    %c0_8 = arith.constant 0 : index
    %4 = memref.load %arg0[%c0_7, %c0_8] : memref<4x4xi32, #tpu.memory_space<smem>>
    %5 = arith.index_cast %4 : i32 to index
    %c0_9 = arith.constant 0 : index
    %6 = vector.load %arg3[%5, %c0_9] : memref<8x128xf32, #tpu.memory_space<vmem>>, vector<1x128xf32>
    %c1 = arith.constant 1 : index
    %c0_10 = arith.constant 0 : index
    %7 = memref.load %arg0[%c1, %c0_10] : memref<4x4xi32, #tpu.memory_space<smem>>
    %8 = arith.index_cast %7 : i32 to index
    %c0_11 = arith.constant 0 : index
    %9 = vector.load %arg3[%8, %c0_11] : memref<8x128xf32, #tpu.memory_space<vmem>>, vector<1x128xf32>
    %c2 = arith.constant 2 : index
    %c0_12 = arith.constant 0 : index
    %10 = memref.load %arg0[%c2, %c0_12] : memref<4x4xi32, #tpu.memory_space<smem>>
    %11 = arith.index_cast %10 : i32 to index
    %c0_13 = arith.constant 0 : index
    %12 = vector.load %arg3[%11, %c0_13] : memref<8x128xf32, #tpu.memory_space<vmem>>, vector<1x128xf32>
    %c3 = arith.constant 3 : index
    %c0_14 = arith.constant 0 : index
    %13 = memref.load %arg0[%c3, %c0_14] : memref<4x4xi32, #tpu.memory_space<smem>>
    %14 = arith.index_cast %13 : i32 to index
    %c0_15 = arith.constant 0 : index
    %15 = vector.load %arg3[%14, %c0_15] : memref<8x128xf32, #tpu.memory_space<vmem>>, vector<1x128xf32>
    %16 = tpu.concatenate %6, %9, %12, %15 in 0 : vector<1x128xf32>, vector<1x128xf32>, vector<1x128xf32>, vector<1x128xf32> -> vector<4x128xf32>
    %17 = vector.broadcast %1 : vector<1x128xf32> to vector<4x128xf32>
    %18 = arith.addf %16, %17 : vector<4x128xf32>
    %cst = arith.constant dense<0.000000e+00> : vector<4x128xf32>
    %19 = tpu.matmul %2, %0, %cst {dimension_numbers = #tpu.dot_dimension_numbers<[1], [0], [0], [1], [0, 0, 1, 1], [], []>} : vector<4x32xf32>, vector<32x128xf32>, vector<4x128xf32> -> vector<4x128xf32>
    %20 = arith.addf %18, %19 : vector<4x128xf32>
    %21 = vector.extract_strided_slice %20 {offsets = [0, 0], sizes = [4, 32], strides = [1, 1]} : vector<4x128xf32> to vector<4x32xf32>
    %22 = arith.negf %21 : vector<4x32xf32>
    %23 = math.exp %22 : vector<4x32xf32>
    %cst_16 = arith.constant 1.000000e+00 : f32
    %24 = vector.broadcast %cst_16 : f32 to vector<4x32xf32>
    %25 = arith.addf %24, %23 : vector<4x32xf32>
    %26 = arith.divf %24, %25 : vector<4x32xf32>
    %27 = vector.extract_strided_slice %20 {offsets = [0, 32], sizes = [4, 32], strides = [1, 1]} : vector<4x128xf32> to vector<4x32xf32>
    %28 = arith.negf %27 : vector<4x32xf32>
    %29 = math.exp %28 : vector<4x32xf32>
    %cst_17 = arith.constant 1.000000e+00 : f32
    %30 = vector.broadcast %cst_17 : f32 to vector<4x32xf32>
    %31 = arith.addf %30, %29 : vector<4x32xf32>
    %32 = arith.divf %30, %31 : vector<4x32xf32>
    %33 = vector.extract_strided_slice %20 {offsets = [0, 64], sizes = [4, 32], strides = [1, 1]} : vector<4x128xf32> to vector<4x32xf32>
    %34 = math.tanh %33 : vector<4x32xf32>
    %35 = vector.extract_strided_slice %20 {offsets = [0, 96], sizes = [4, 32], strides = [1, 1]} : vector<4x128xf32> to vector<4x32xf32>
    %36 = arith.negf %35 : vector<4x32xf32>
    %37 = math.exp %36 : vector<4x32xf32>
    %cst_18 = arith.constant 1.000000e+00 : f32
    %38 = vector.broadcast %cst_18 : f32 to vector<4x32xf32>
    %39 = arith.addf %38, %37 : vector<4x32xf32>
    %40 = arith.divf %38, %39 : vector<4x32xf32>
    %41 = arith.mulf %32, %3 : vector<4x32xf32>
    %42 = arith.mulf %26, %34 : vector<4x32xf32>
    %43 = arith.addf %41, %42 : vector<4x32xf32>
    %44 = math.tanh %43 : vector<4x32xf32>
    %45 = arith.mulf %40, %44 : vector<4x32xf32>
    %c0_19 = arith.constant 0 : index
    %c1_20 = arith.constant 1 : index
    %46 = memref.load %arg0[%c0_19, %c1_20] : memref<4x4xi32, #tpu.memory_space<smem>>
    %47 = arith.index_cast %46 : i32 to index
    %c0_21 = arith.constant 0 : index
    %48 = vector.load %arg3[%47, %c0_21] : memref<8x128xf32, #tpu.memory_space<vmem>>, vector<1x128xf32>
    %c1_22 = arith.constant 1 : index
    %c1_23 = arith.constant 1 : index
    %49 = memref.load %arg0[%c1_22, %c1_23] : memref<4x4xi32, #tpu.memory_space<smem>>
    %50 = arith.index_cast %49 : i32 to index
    %c0_24 = arith.constant 0 : index
    %51 = vector.load %arg3[%50, %c0_24] : memref<8x128xf32, #tpu.memory_space<vmem>>, vector<1x128xf32>
    %c2_25 = arith.constant 2 : index
    %c1_26 = arith.constant 1 : index
    %52 = memref.load %arg0[%c2_25, %c1_26] : memref<4x4xi32, #tpu.memory_space<smem>>
    %53 = arith.index_cast %52 : i32 to index
    %c0_27 = arith.constant 0 : index
    %54 = vector.load %arg3[%53, %c0_27] : memref<8x128xf32, #tpu.memory_space<vmem>>, vector<1x128xf32>
    %c3_28 = arith.constant 3 : index
    %c1_29 = arith.constant 1 : index
    %55 = memref.load %arg0[%c3_28, %c1_29] : memref<4x4xi32, #tpu.memory_space<smem>>
    %56 = arith.index_cast %55 : i32 to index
    %c0_30 = arith.constant 0 : index
    %57 = vector.load %arg3[%56, %c0_30] : memref<8x128xf32, #tpu.memory_space<vmem>>, vector<1x128xf32>
    %58 = tpu.concatenate %48, %51, %54, %57 in 0 : vector<1x128xf32>, vector<1x128xf32>, vector<1x128xf32>, vector<1x128xf32> -> vector<4x128xf32>
    %59 = vector.broadcast %1 : vector<1x128xf32> to vector<4x128xf32>
    %60 = arith.addf %58, %59 : vector<4x128xf32>
    %cst_31 = arith.constant dense<0.000000e+00> : vector<4x128xf32>
    %61 = tpu.matmul %45, %0, %cst_31 {dimension_numbers = #tpu.dot_dimension_numbers<[1], [0], [0], [1], [0, 0, 1, 1], [], []>} : vector<4x32xf32>, vector<32x128xf32>, vector<4x128xf32> -> vector<4x128xf32>
    %62 = arith.addf %60, %61 : vector<4x128xf32>
    %63 = vector.extract_strided_slice %62 {offsets = [0, 0], sizes = [4, 32], strides = [1, 1]} : vector<4x128xf32> to vector<4x32xf32>
    %64 = arith.negf %63 : vector<4x32xf32>
    %65 = math.exp %64 : vector<4x32xf32>
    %cst_32 = arith.constant 1.000000e+00 : f32
    %66 = vector.broadcast %cst_32 : f32 to vector<4x32xf32>
    %67 = arith.addf %66, %65 : vector<4x32xf32>
    %68 = arith.divf %66, %67 : vector<4x32xf32>
    %69 = vector.extract_strided_slice %62 {offsets = [0, 32], sizes = [4, 32], strides = [1, 1]} : vector<4x128xf32> to vector<4x32xf32>
    %70 = arith.negf %69 : vector<4x32xf32>
    %71 = math.exp %70 : vector<4x32xf32>
    %cst_33 = arith.constant 1.000000e+00 : f32
    %72 = vector.broadcast %cst_33 : f32 to vector<4x32xf32>
    %73 = arith.addf %72, %71 : vector<4x32xf32>
    %74 = arith.divf %72, %73 : vector<4x32xf32>
    %75 = vector.extract_strided_slice %62 {offsets = [0, 64], sizes = [4, 32], strides = [1, 1]} : vector<4x128xf32> to vector<4x32xf32>
    %76 = math.tanh %75 : vector<4x32xf32>
    %77 = vector.extract_strided_slice %62 {offsets = [0, 96], sizes = [4, 32], strides = [1, 1]} : vector<4x128xf32> to vector<4x32xf32>
    %78 = arith.negf %77 : vector<4x32xf32>
    %79 = math.exp %78 : vector<4x32xf32>
    %cst_34 = arith.constant 1.000000e+00 : f32
    %80 = vector.broadcast %cst_34 : f32 to vector<4x32xf32>
    %81 = arith.addf %80, %79 : vector<4x32xf32>
    %82 = arith.divf %80, %81 : vector<4x32xf32>
    %83 = arith.mulf %74, %43 : vector<4x32xf32>
    %84 = arith.mulf %68, %76 : vector<4x32xf32>
    %85 = arith.addf %83, %84 : vector<4x32xf32>
    %86 = math.tanh %85 : vector<4x32xf32>
    %87 = arith.mulf %82, %86 : vector<4x32xf32>
    %c0_35 = arith.constant 0 : index
    %c2_36 = arith.constant 2 : index
    %88 = memref.load %arg0[%c0_35, %c2_36] : memref<4x4xi32, #tpu.memory_space<smem>>
    %89 = arith.index_cast %88 : i32 to index
    %c0_37 = arith.constant 0 : index
    %90 = vector.load %arg3[%89, %c0_37] : memref<8x128xf32, #tpu.memory_space<vmem>>, vector<1x128xf32>
    %c1_38 = arith.constant 1 : index
    %c2_39 = arith.constant 2 : index
    %91 = memref.load %arg0[%c1_38, %c2_39] : memref<4x4xi32, #tpu.memory_space<smem>>
    %92 = arith.index_cast %91 : i32 to index
    %c0_40 = arith.constant 0 : index
    %93 = vector.load %arg3[%92, %c0_40] : memref<8x128xf32, #tpu.memory_space<vmem>>, vector<1x128xf32>
    %c2_41 = arith.constant 2 : index
    %c2_42 = arith.constant 2 : index
    %94 = memref.load %arg0[%c2_41, %c2_42] : memref<4x4xi32, #tpu.memory_space<smem>>
    %95 = arith.index_cast %94 : i32 to index
    %c0_43 = arith.constant 0 : index
    %96 = vector.load %arg3[%95, %c0_43] : memref<8x128xf32, #tpu.memory_space<vmem>>, vector<1x128xf32>
    %c3_44 = arith.constant 3 : index
    %c2_45 = arith.constant 2 : index
    %97 = memref.load %arg0[%c3_44, %c2_45] : memref<4x4xi32, #tpu.memory_space<smem>>
    %98 = arith.index_cast %97 : i32 to index
    %c0_46 = arith.constant 0 : index
    %99 = vector.load %arg3[%98, %c0_46] : memref<8x128xf32, #tpu.memory_space<vmem>>, vector<1x128xf32>
    %100 = tpu.concatenate %90, %93, %96, %99 in 0 : vector<1x128xf32>, vector<1x128xf32>, vector<1x128xf32>, vector<1x128xf32> -> vector<4x128xf32>
    %101 = vector.broadcast %1 : vector<1x128xf32> to vector<4x128xf32>
    %102 = arith.addf %100, %101 : vector<4x128xf32>
    %cst_47 = arith.constant dense<0.000000e+00> : vector<4x128xf32>
    %103 = tpu.matmul %87, %0, %cst_47 {dimension_numbers = #tpu.dot_dimension_numbers<[1], [0], [0], [1], [0, 0, 1, 1], [], []>} : vector<4x32xf32>, vector<32x128xf32>, vector<4x128xf32> -> vector<4x128xf32>
    %104 = arith.addf %102, %103 : vector<4x128xf32>
    %105 = vector.extract_strided_slice %104 {offsets = [0, 0], sizes = [4, 32], strides = [1, 1]} : vector<4x128xf32> to vector<4x32xf32>
    %106 = arith.negf %105 : vector<4x32xf32>
    %107 = math.exp %106 : vector<4x32xf32>
    %cst_48 = arith.constant 1.000000e+00 : f32
    %108 = vector.broadcast %cst_48 : f32 to vector<4x32xf32>
    %109 = arith.addf %108, %107 : vector<4x32xf32>
    %110 = arith.divf %108, %109 : vector<4x32xf32>
    %111 = vector.extract_strided_slice %104 {offsets = [0, 32], sizes = [4, 32], strides = [1, 1]} : vector<4x128xf32> to vector<4x32xf32>
    %112 = arith.negf %111 : vector<4x32xf32>
    %113 = math.exp %112 : vector<4x32xf32>
    %cst_49 = arith.constant 1.000000e+00 : f32
    %114 = vector.broadcast %cst_49 : f32 to vector<4x32xf32>
    %115 = arith.addf %114, %113 : vector<4x32xf32>
    %116 = arith.divf %114, %115 : vector<4x32xf32>
    %117 = vector.extract_strided_slice %104 {offsets = [0, 64], sizes = [4, 32], strides = [1, 1]} : vector<4x128xf32> to vector<4x32xf32>
    %118 = math.tanh %117 : vector<4x32xf32>
    %119 = vector.extract_strided_slice %104 {offsets = [0, 96], sizes = [4, 32], strides = [1, 1]} : vector<4x128xf32> to vector<4x32xf32>
    %120 = arith.negf %119 : vector<4x32xf32>
    %121 = math.exp %120 : vector<4x32xf32>
    %cst_50 = arith.constant 1.000000e+00 : f32
    %122 = vector.broadcast %cst_50 : f32 to vector<4x32xf32>
    %123 = arith.addf %122, %121 : vector<4x32xf32>
    %124 = arith.divf %122, %123 : vector<4x32xf32>
    %125 = arith.mulf %116, %85 : vector<4x32xf32>
    %126 = arith.mulf %110, %118 : vector<4x32xf32>
    %127 = arith.addf %125, %126 : vector<4x32xf32>
    %128 = math.tanh %127 : vector<4x32xf32>
    %129 = arith.mulf %124, %128 : vector<4x32xf32>
    %c0_51 = arith.constant 0 : index
    %c3_52 = arith.constant 3 : index
    %130 = memref.load %arg0[%c0_51, %c3_52] : memref<4x4xi32, #tpu.memory_space<smem>>
    %131 = arith.index_cast %130 : i32 to index
    %c0_53 = arith.constant 0 : index
    %132 = vector.load %arg3[%131, %c0_53] : memref<8x128xf32, #tpu.memory_space<vmem>>, vector<1x128xf32>
    %c1_54 = arith.constant 1 : index
    %c3_55 = arith.constant 3 : index
    %133 = memref.load %arg0[%c1_54, %c3_55] : memref<4x4xi32, #tpu.memory_space<smem>>
    %134 = arith.index_cast %133 : i32 to index
    %c0_56 = arith.constant 0 : index
    %135 = vector.load %arg3[%134, %c0_56] : memref<8x128xf32, #tpu.memory_space<vmem>>, vector<1x128xf32>
    %c2_57 = arith.constant 2 : index
    %c3_58 = arith.constant 3 : index
    %136 = memref.load %arg0[%c2_57, %c3_58] : memref<4x4xi32, #tpu.memory_space<smem>>
    %137 = arith.index_cast %136 : i32 to index
    %c0_59 = arith.constant 0 : index
    %138 = vector.load %arg3[%137, %c0_59] : memref<8x128xf32, #tpu.memory_space<vmem>>, vector<1x128xf32>
    %c3_60 = arith.constant 3 : index
    %c3_61 = arith.constant 3 : index
    %139 = memref.load %arg0[%c3_60, %c3_61] : memref<4x4xi32, #tpu.memory_space<smem>>
    %140 = arith.index_cast %139 : i32 to index
    %c0_62 = arith.constant 0 : index
    %141 = vector.load %arg3[%140, %c0_62] : memref<8x128xf32, #tpu.memory_space<vmem>>, vector<1x128xf32>
    %142 = tpu.concatenate %132, %135, %138, %141 in 0 : vector<1x128xf32>, vector<1x128xf32>, vector<1x128xf32>, vector<1x128xf32> -> vector<4x128xf32>
    %143 = vector.broadcast %1 : vector<1x128xf32> to vector<4x128xf32>
    %144 = arith.addf %142, %143 : vector<4x128xf32>
    %cst_63 = arith.constant dense<0.000000e+00> : vector<4x128xf32>
    %145 = tpu.matmul %129, %0, %cst_63 {dimension_numbers = #tpu.dot_dimension_numbers<[1], [0], [0], [1], [0, 0, 1, 1], [], []>} : vector<4x32xf32>, vector<32x128xf32>, vector<4x128xf32> -> vector<4x128xf32>
    %146 = arith.addf %144, %145 : vector<4x128xf32>
    %147 = vector.extract_strided_slice %146 {offsets = [0, 0], sizes = [4, 32], strides = [1, 1]} : vector<4x128xf32> to vector<4x32xf32>
    %148 = arith.negf %147 : vector<4x32xf32>
    %149 = math.exp %148 : vector<4x32xf32>
    %cst_64 = arith.constant 1.000000e+00 : f32
    %150 = vector.broadcast %cst_64 : f32 to vector<4x32xf32>
    %151 = arith.addf %150, %149 : vector<4x32xf32>
    %152 = arith.divf %150, %151 : vector<4x32xf32>
    %153 = vector.extract_strided_slice %146 {offsets = [0, 32], sizes = [4, 32], strides = [1, 1]} : vector<4x128xf32> to vector<4x32xf32>
    %154 = arith.negf %153 : vector<4x32xf32>
    %155 = math.exp %154 : vector<4x32xf32>
    %cst_65 = arith.constant 1.000000e+00 : f32
    %156 = vector.broadcast %cst_65 : f32 to vector<4x32xf32>
    %157 = arith.addf %156, %155 : vector<4x32xf32>
    %158 = arith.divf %156, %157 : vector<4x32xf32>
    %159 = vector.extract_strided_slice %146 {offsets = [0, 64], sizes = [4, 32], strides = [1, 1]} : vector<4x128xf32> to vector<4x32xf32>
    %160 = math.tanh %159 : vector<4x32xf32>
    %161 = vector.extract_strided_slice %146 {offsets = [0, 96], sizes = [4, 32], strides = [1, 1]} : vector<4x128xf32> to vector<4x32xf32>
    %162 = arith.negf %161 : vector<4x32xf32>
    %163 = math.exp %162 : vector<4x32xf32>
    %cst_66 = arith.constant 1.000000e+00 : f32
    %164 = vector.broadcast %cst_66 : f32 to vector<4x32xf32>
    %165 = arith.addf %164, %163 : vector<4x32xf32>
    %166 = arith.divf %164, %165 : vector<4x32xf32>
    %167 = arith.mulf %158, %127 : vector<4x32xf32>
    %168 = arith.mulf %152, %160 : vector<4x32xf32>
    %169 = arith.addf %167, %168 : vector<4x32xf32>
    %170 = math.tanh %169 : vector<4x32xf32>
    %171 = arith.mulf %166, %170 : vector<4x32xf32>
    %c0_67 = arith.constant 0 : index
    %c0_68 = arith.constant 0 : index
    %172 = vector.load %arg6[%c0_67, %c0_68] : memref<4x32xf32, #tpu.memory_space<vmem>>, vector<4x32xf32>
    tpu.vector_store %arg6[%c0_67, %c0_68], %171 {strides = array<i32>} : memref<4x32xf32, #tpu.memory_space<vmem>>, vector<4x32xf32>,
    %c0_69 = arith.constant 0 : index
    %c0_70 = arith.constant 0 : index
    %173 = vector.load %arg7[%c0_69, %c0_70] : memref<4x32xf32, #tpu.memory_space<vmem>>, vector<4x32xf32>
    tpu.vector_store %arg7[%c0_69, %c0_70], %169 {strides = array<i32>} : memref<4x32xf32, #tpu.memory_space<vmem>>, vector<4x32xf32>,
    return
  }
}

</mosaic_0001>

<llo_original>
// kernel: _run_level.1
$region0: #{_run_level.1}
  #allocation0 [shape = 'u32[]', space=smem, size = 0x4, offset = 0x4, fixed_abs, tag = 'smem constant byte address 0x4 - core index']
  #allocation1 [shape = 'u32[72,128]{1,0:T(1,128)}', space=vmem, size = 0x9000, scoped, tag = 'internal scratch']
  %s0 = inlined_call_operand.vmem [shape: s32[4,4], index: 0, kind: input, shape index: {}]
  %s1 = inlined_call_operand.vmem [shape: f32[4,32], index: 1, kind: input, shape index: {}]
  %s2 = inlined_call_operand.vmem [shape: f32[4,32], index: 2, kind: input, shape index: {}]
  %s3 = inlined_call_operand.hbm [shape: f32[8,128], index: 3, kind: input, shape index: {}]
  %s4 = inlined_call_operand.vmem [shape: f32[32,128], index: 4, kind: input, shape index: {}]
  %s5 = inlined_call_operand.vmem [shape: f32[1,128], index: 5, kind: input, shape index: {}]
  %s6 = inlined_call_operand.hbm [shape: f32[4,32], index: 6, kind: output, shape index: {0}]
  %s7 = inlined_call_operand.hbm [shape: f32[4,32], index: 7, kind: output, shape index: {1}]
  %8 = xla_tuple %s6, %s7
  %s9 = sld [smem:[#allocation0]]
  $region50: #{_run_level.1} parent=0
    _
  %s11 = ssub.s32 1, %s9
  %s12 = scalar_select 0, %s11, %s9
  $region1: #{_run_level.1} parent=0
    #allocation2 [shape = 'u8[2048]{0}', space=smem, size = 0x800, scoped, tag = 'input window, operand 0, single buffered']
    #allocation3 [shape = 's32[1]{0}', space=sflag, size = 0x4, scoped, tag = 'scoped memory for _run_level.1']
    #allocation4 [shape = 's32[1]{0}', space=sflag, size = 0x4, scoped, tag = 'scoped memory for _run_level.1']
    #allocation5 [shape = 's32[1]{0}', space=sflag, size = 0x4, scoped, tag = 'scoped memory for _run_level.1']
    #allocation6 [shape = 'u8[4096]{0}', space=vmem, size = 0x1000, scoped, tag = 'input window, operand 3, single buffered']
    #allocation7 [shape = 'u8[2048]{0}', space=vmem, size = 0x800, scoped, tag = 'output window, operand 0, single buffered']
    #allocation8 [shape = 'u8[2048]{0}', space=vmem, size = 0x800, scoped, tag = 'output window, operand 1, single buffered']
    #allocation9 [shape = 's32[1]{0}', space=sflag, size = 0x4, scoped, tag = 'scoped memory for _run_level.1']
    %13 = vsyncpa [#allocation5], 0
    %14 = vsyncpa [#allocation3], 0
    %15 = vsyncpa [#allocation4], 0
    %16 = vsyncpa [#allocation9], 0
    // Predicated region
    $region2: #{_run_level.1} parent=1 // pred_check
      _
    $region3: #{_run_level.1} parent=1 // pred_check_branch
      %18 = sbr.rel (0) target = $region5
    $region4: #{_run_level.1} parent=1 // pred_region
      %20 = vsyncadd [#allocation5], 0
      %s22 = sshll.u32 %s0, 4
      %s23 = int_to_ptr.vmem [resolvable:$true] %s22
      %25 = dma.vmem_to_smem %s23, 64, [#allocation2], [#allocation5]
    $region5: #{_run_level.1} parent=1 // pred_fallthru
      _
    // Predicated region
    $region6: #{_run_level.1} parent=1 // pred_check
      _
    $region7: #{_run_level.1} parent=1 // pred_check_branch
      %27 = sbr.rel (0) target = $region9
    $region8: #{_run_level.1} parent=1 // pred_region
      _
    $region9: #{_run_level.1} parent=1 // pred_fallthru
      _
    // Predicated region
    $region10: #{_run_level.1} parent=1 // pred_check
      _
    $region11: #{_run_level.1} parent=1 // pred_check_branch
      %29 = sbr.rel (0) target = $region13
    $region12: #{_run_level.1} parent=1 // pred_region
      _
    $region13: #{_run_level.1} parent=1 // pred_fallthru
      _
    // Predicated region
    $region14: #{_run_level.1} parent=1 // pred_check
      _
    $region15: #{_run_level.1} parent=1 // pred_check_branch
      %31 = sbr.rel (0) target = $region17
    $region16: #{_run_level.1} parent=1 // pred_region
      %33 = vsyncadd [#allocation3], 0
      %s35 = sshll.u32 %s3, 4
      %s36 = int_to_ptr.hbm [resolvable:$true] %s35
      %s37 = sshll.u32 [#allocation6], 4
      %s38 = int_to_ptr.vmem [resolvable:$true] %s37
      %40 = dma.hbm_to_vmem [thread:$0]  %s36, 128, %s38, [#allocation3]
    $region17: #{_run_level.1} parent=1 // pred_fallthru
      _
    // Predicated region
    $region18: #{_run_level.1} parent=1 // pred_check
      _
    $region19: #{_run_level.1} parent=1 // pred_check_branch
      %42 = sbr.rel (0) target = $region21
    $region20: #{_run_level.1} parent=1 // pred_region
      _
    $region21: #{_run_level.1} parent=1 // pred_fallthru
      _
    // Predicated region
    $region22: #{_run_level.1} parent=1 // pred_check
      _
    $region23: #{_run_level.1} parent=1 // pred_check_branch
      %44 = sbr.rel (0) target = $region25
    $region24: #{_run_level.1} parent=1 // pred_region
      _
    $region25: #{_run_level.1} parent=1 // pred_fallthru
      _
    // Predicated region
    $region26: #{_run_level.1} parent=1 // pred_check
      _
    $region27: #{_run_level.1} parent=1 // pred_check_branch
      %46 = sbr.rel (0) target = $region29
    $region28: #{_run_level.1} parent=1 // pred_region
      %48 = dma.done [#allocation5], 64
    $region29: #{_run_level.1} parent=1 // pred_fallthru
      _
    // Predicated region
    $region30: #{_run_level.1} parent=1 // pred_check
      _
    $region31: #{_run_level.1} parent=1 // pred_check_branch
      %50 = sbr.rel (0) target = $region33
    $region32: #{_run_level.1} parent=1 // pred_region
      %52 = dma.done [#allocation3], 128
    $region33: #{_run_level.1} parent=1 // pred_fallthru
      _
    %53 = sfence
    %v54 = vld [vmem:[%s4] sm:$0xff]
    %v55 = vld [vmem:[%s4 + $0x8] sm:$0xff]
    %v56 = vld [vmem:[%s4 + $0x10] sm:$0xff]
    %v57 = vld [vmem:[%s4 + $0x18] sm:$0xff]
    %v58 = vld [vmem:[%s5] sm:$0x1]
    %v59 = vld [vmem:[%s1] sm:$0xf]
    %v60 = vld [vmem:[%s2] sm:$0xf]
    %s61 = sld [smem:[#allocation2]]
    %s62 = scalar_lea.vmem [#allocation6], %s61
    %v63 = vld [vmem:[%s62] sm:$0x1]
    %s64 = sld [smem:[#allocation2 + $0x80]]
    %s65 = scalar_lea.vmem [#allocation6], %s64
    %v66 = vld [vmem:[%s65] sm:$0x1]
    %s67 = sld [smem:[#allocation2 + $0x100]]
    %s68 = scalar_lea.vmem [#allocation6], %s67
    %v69 = vld [vmem:[%s68] sm:$0x1]
    %s70 = sld [smem:[#allocation2 + $0x180]]
    %s71 = scalar_lea.vmem [#allocation6], %s70
    %v72 = vld [vmem:[%s71] sm:$0x1]
    %v74 = vrot.slane %v66, 7
    %v77 = vrot.slane %v69, 6
    %v80 = vrot.slane %v72, 5
    %vm82 = vcmask 1040384
    %v83 = vsel %vm82, %v63, %v74
    %vm84 = vcmask 1041408
    %v85 = vsel %vm84, %v83, %v77
    %vm86 = vcmask 1042432
    %v87 = vsel %vm86, %v85, %v80
    %v89 = vperm.slane %v58, 0
    %v91 = vadd.f32 %v87, %v89
    %vm92 = vcmask 261120
    %v94 = vsel %vm92, %v59, 0
    %96 = vmatpush.msra.mxu0 0.0
    %97 = vmatpush.msra.mxu0 0.0
    %98 = vmatpush.msra.mxu0 0.0
    %99 = vmatpush.msra.mxu0 0.0
    %100 = vmatpush.msra.mxu0 0.0
    %101 = vmatpush.msra.mxu0 0.0
    %102 = vmatpush.msra.mxu0 0.0
    %103 = vmatpush.msra.mxu0 0.0
    %104 = vmatpush.msra.mxu0 0.0
    %105 = vmatpush.msra.mxu0 0.0
    %106 = vmatpush.msra.mxu0 0.0
    %107 = vmatpush.msra.mxu0 0.0
    %108 = vmatpush.msra.mxu0 %v57
    %109 = vmatpush.msra.mxu0 %v56
    %110 = vmatpush.msra.mxu0 %v55
    %111 = vmatpush.msra.mxu0 %v54
    %112 = vmatmul.f32.gmra.mxu0 %v94
    %v113 = vpop.f32.mrf.mxu0
    %v114 = vadd.f32 0.0, %v113
    %115 = vdwg.mxu0
    %v116 = vadd.f32 %v91, %v114
    %v117 = vxor.u32 %v116, 2147483648
    %v118 = vmul.f32 %v117, 1.442695
    %v119 = vpow.pop %v118
    %v120 = vadd.f32 %v119, 1.0
    %v121 = vrcp.pop %v120
    %v122 = vmul.f32 %v120, %v121
    %v123 = vsub.f32 1.0, %v122
    %v124 = vmul.f32 %v121, %v123
    %v125 = vadd.f32 %v121, %v124
    %vm126 = vweird.f32 %v120
    %vm127 = vweird.f32 %v121
    %vm128 = vmor %vm126, %vm127
    %v129 = vsel %vm128, %v121, %v125
    %v130 = vand.u32 2147483647, %v120
    %vm131 = vcmp.eq.f32.partialorder %v130, 8.507059e+37
    %v132 = vand.u32 %v120, 2147483648
    %v133 = vor.u32 1.1754944e-38, %v132
    %v134 = vsel %vm131, %v133, %v129
    %v135 = vmul.f32 1.0, %v134
    %v136 = vtanh.pop %v116
    %138 = vrot.lane.b32.xlu0 %v60, 32
    %v139 = vpop.permute.xlu0 %138
    %v141 = vmul.f32 %v135, %v139
    %143 = vrot.lane.b32.xlu0 %v136, 64
    %v144 = vpop.permute.xlu0 %143
    %v146 = vmul.f32 %v135, %v144
    %148 = vrot.lane.b32.xlu0 %v146, 32
    %v149 = vpop.permute.xlu0 %148
    %v151 = vadd.f32 %v141, %v149
    %v152 = vtanh.pop %v151
    %154 = vrot.lane.b32.xlu0 %v152, 64
    %v155 = vpop.permute.xlu0 %154
    %v157 = vmul.f32 %v135, %v155
    %s158 = sld [smem:[#allocation2 + $0x1]]
    %s159 = scalar_lea.vmem [#allocation6], %s158
    %v160 = vld [vmem:[%s159] sm:$0x1]
    %s161 = sld [smem:[#allocation2 + $0x81]]
    %s162 = scalar_lea.vmem [#allocation6], %s161
    %v163 = vld [vmem:[%s162] sm:$0x1]
    %s164 = sld [smem:[#allocation2 + $0x101]]
    %s165 = scalar_lea.vmem [#allocation6], %s164
    %v166 = vld [vmem:[%s165] sm:$0x1]
    %s167 = sld [smem:[#allocation2 + $0x181]]
    %s168 = scalar_lea.vmem [#allocation6], %s167
    %v169 = vld [vmem:[%s168] sm:$0x1]
    %v171 = vrot.slane %v163, 7
    %v174 = vrot.slane %v166, 6
    %v177 = vrot.slane %v169, 5
    %v179 = vsel %vm82, %v160, %v171
    %v180 = vsel %vm84, %v179, %v174
    %v181 = vsel %vm86, %v180, %v177
    %v182 = vadd.f32 %v181, %v89
    %184 = vrot.lane.b32.xlu0 %v157, 32
    %v185 = vpop.permute.xlu0 %184
    %v186 = vsel %vm92, %v185, 0
    %188 = vmatpush.msra.mxu0 0.0
    %189 = vmatpush.msra.mxu0 0.0
    %190 = vmatpush.msra.mxu0 0.0
    %191 = vmatpush.msra.mxu0 0.0
    %192 = vmatpush.msra.mxu0 0.0
    %193 = vmatpush.msra.mxu0 0.0
    %194 = vmatpush.msra.mxu0 0.0
    %195 = vmatpush.msra.mxu0 0.0
    %196 = vmatpush.msra.mxu0 0.0
    %197 = vmatpush.msra.mxu0 0.0
    %198 = vmatpush.msra.mxu0 0.0
    %199 = vmatpush.msra.mxu0 0.0
    %200 = vmatpush.msra.mxu0 %v57
    %201 = vmatpush.msra.mxu0 %v56
    %202 = vmatpush.msra.mxu0 %v55
    %203 = vmatpush.msra.mxu0 %v54
    %204 = vmatmul.f32.gmra.mxu0 %v186
    %v205 = vpop.f32.mrf.mxu0
    %v206 = vadd.f32 0.0, %v205
    %207 = vdwg.mxu0
    %v208 = vadd.f32 %v182, %v206
    %v209 = vxor.u32 %v208, 2147483648
    %v210 = vmul.f32 %v209, 1.442695
    %v211 = vpow.pop %v210
    %v212 = vadd.f32 %v211, 1.0
    %v213 = vrcp.pop %v212
    %v214 = vmul.f32 %v212, %v213
    %v215 = vsub.f32 1.0, %v214
    %v216 = vmul.f32 %v213, %v215
    %v217 = vadd.f32 %v213, %v216
    %vm218 = vweird.f32 %v212
    %vm219 = vweird.f32 %v213
    %vm220 = vmor %vm218, %vm219
    %v221 = vsel %vm220, %v213, %v217
    %v222 = vand.u32 2147483647, %v212
    %vm223 = vcmp.eq.f32.partialorder %v222, 8.507059e+37
    %v224 = vand.u32 %v212, 2147483648
    %v225 = vor.u32 1.1754944e-38, %v224
    %v226 = vsel %vm223, %v225, %v221
    %v227 = vmul.f32 1.0, %v226
    %v228 = vtanh.pop %v208
    %v229 = vmul.f32 %v227, %v151
    %231 = vrot.lane.b32.xlu0 %v228, 64
    %v232 = vpop.permute.xlu0 %231
    %v234 = vmul.f32 %v227, %v232
    %236 = vrot.lane.b32.xlu0 %v234, 32
    %v237 = vpop.permute.xlu0 %236
    %v239 = vadd.f32 %v229, %v237
    %v240 = vtanh.pop %v239
    %242 = vrot.lane.b32.xlu0 %v240, 64
    %v243 = vpop.permute.xlu0 %242
    %v245 = vmul.f32 %v227, %v243
    %s246 = sld [smem:[#allocation2 + $0x2]]
    %s247 = scalar_lea.vmem [#allocation6], %s246
    %v248 = vld [vmem:[%s247] sm:$0x1]
    %s249 = sld [smem:[#allocation2 + $0x82]]
    %s250 = scalar_lea.vmem [#allocation6], %s249
    %v251 = vld [vmem:[%s250] sm:$0x1]
    %s252 = sld [smem:[#allocation2 + $0x102]]
    %s253 = scalar_lea.vmem [#allocation6], %s252
    %v254 = vld [vmem:[%s253] sm:$0x1]
    %s255 = sld [smem:[#allocation2 + $0x182]]
    %s256 = scalar_lea.vmem [#allocation6], %s255
    %v257 = vld [vmem:[%s256] sm:$0x1]
    %v259 = vrot.slane %v251, 7
    %v262 = vrot.slane %v254, 6
    %v265 = vrot.slane %v257, 5
    %v267 = vsel %vm82, %v248, %v259
    %v268 = vsel %vm84, %v267, %v262
    %v269 = vsel %vm86, %v268, %v265
    %v270 = vadd.f32 %v269, %v89
    %272 = vrot.lane.b32.xlu0 %v245, 32
    %v273 = vpop.permute.xlu0 %272
    %v274 = vsel %vm92, %v273, 0
    %276 = vmatpush.msra.mxu0 0.0
    %277 = vmatpush.msra.mxu0 0.0
    %278 = vmatpush.msra.mxu0 0.0
    %279 = vmatpush.msra.mxu0 0.0
    %280 = vmatpush.msra.mxu0 0.0
    %281 = vmatpush.msra.mxu0 0.0
    %282 = vmatpush.msra.mxu0 0.0
    %283 = vmatpush.msra.mxu0 0.0
    %284 = vmatpush.msra.mxu0 0.0
    %285 = vmatpush.msra.mxu0 0.0
    %286 = vmatpush.msra.mxu0 0.0
    %287 = vmatpush.msra.mxu0 0.0
    %288 = vmatpush.msra.mxu0 %v57
    %289 = vmatpush.msra.mxu0 %v56
    %290 = vmatpush.msra.mxu0 %v55
    %291 = vmatpush.msra.mxu0 %v54
    %292 = vmatmul.f32.gmra.mxu0 %v274
    %v293 = vpop.f32.mrf.mxu0
    %v294 = vadd.f32 0.0, %v293
    %295 = vdwg.mxu0
    %v296 = vadd.f32 %v270, %v294
    %v297 = vxor.u32 %v296, 2147483648
    %v298 = vmul.f32 %v297, 1.442695
    %v299 = vpow.pop %v298
    %v300 = vadd.f32 %v299, 1.0
    %v301 = vrcp.pop %v300
    %v302 = vmul.f32 %v300, %v301
    %v303 = vsub.f32 1.0, %v302
    %v304 = vmul.f32 %v301, %v303
    %v305 = vadd.f32 %v301, %v304
    %vm306 = vweird.f32 %v300
    %vm307 = vweird.f32 %v301
    %vm308 = vmor %vm306, %vm307
    %v309 = vsel %vm308, %v301, %v305
    %v310 = vand.u32 2147483647, %v300
    %vm311 = vcmp.eq.f32.partialorder %v310, 8.507059e+37
    %v312 = vand.u32 %v300, 2147483648
    %v313 = vor.u32 1.1754944e-38, %v312
    %v314 = vsel %vm311, %v313, %v309
    %v315 = vmul.f32 1.0, %v314
    %v316 = vtanh.pop %v296
    %v317 = vmul.f32 %v315, %v239
    %319 = vrot.lane.b32.xlu0 %v316, 64
    %v320 = vpop.permute.xlu0 %319
    %v322 = vmul.f32 %v315, %v320
    %324 = vrot.lane.b32.xlu0 %v322, 32
    %v325 = vpop.permute.xlu0 %324
    %v327 = vadd.f32 %v317, %v325
    %v328 = vtanh.pop %v327
    %330 = vrot.lane.b32.xlu0 %v328, 64
    %v331 = vpop.permute.xlu0 %330
    %v333 = vmul.f32 %v315, %v331
    %s334 = sld [smem:[#allocation2 + $0x3]]
    %s335 = scalar_lea.vmem [#allocation6], %s334
    %v336 = vld [vmem:[%s335] sm:$0x1]
    %s337 = sld [smem:[#allocation2 + $0x83]]
    %s338 = scalar_lea.vmem [#allocation6], %s337
    %v339 = vld [vmem:[%s338] sm:$0x1]
    %s340 = sld [smem:[#allocation2 + $0x103]]
    %s341 = scalar_lea.vmem [#allocation6], %s340
    %v342 = vld [vmem:[%s341] sm:$0x1]
    %s343 = sld [smem:[#allocation2 + $0x183]]
    %s344 = scalar_lea.vmem [#allocation6], %s343
    %v345 = vld [vmem:[%s344] sm:$0x1]
    %v347 = vrot.slane %v339, 7
    %v350 = vrot.slane %v342, 6
    %v353 = vrot.slane %v345, 5
    %v355 = vsel %vm82, %v336, %v347
    %v356 = vsel %vm84, %v355, %v350
    %v357 = vsel %vm86, %v356, %v353
    %v358 = vadd.f32 %v357, %v89
    %360 = vrot.lane.b32.xlu0 %v333, 32
    %v361 = vpop.permute.xlu0 %360
    %v362 = vsel %vm92, %v361, 0
    %364 = vmatpush.msra.mxu0 0.0
    %365 = vmatpush.msra.mxu0 0.0
    %366 = vmatpush.msra.mxu0 0.0
    %367 = vmatpush.msra.mxu0 0.0
    %368 = vmatpush.msra.mxu0 0.0
    %369 = vmatpush.msra.mxu0 0.0
    %370 = vmatpush.msra.mxu0 0.0
    %371 = vmatpush.msra.mxu0 0.0
    %372 = vmatpush.msra.mxu0 0.0
    %373 = vmatpush.msra.mxu0 0.0
    %374 = vmatpush.msra.mxu0 0.0
    %375 = vmatpush.msra.mxu0 0.0
    %376 = vmatpush.msra.mxu0 %v57
    %377 = vmatpush.msra.mxu0 %v56
    %378 = vmatpush.msra.mxu0 %v55
    %379 = vmatpush.msra.mxu0 %v54
    %380 = vmatmul.f32.gmra.mxu0 %v362
    %v381 = vpop.f32.mrf.mxu0
    %v382 = vadd.f32 0.0, %v381
    %383 = vdwg.mxu0
    %v384 = vadd.f32 %v358, %v382
    %v385 = vxor.u32 %v384, 2147483648
    %v386 = vmul.f32 %v385, 1.442695
    %v387 = vpow.pop %v386
    %v388 = vadd.f32 %v387, 1.0
    %v389 = vrcp.pop %v388
    %v390 = vmul.f32 %v388, %v389
    %v391 = vsub.f32 1.0, %v390
    %v392 = vmul.f32 %v389, %v391
    %v393 = vadd.f32 %v389, %v392
    %vm394 = vweird.f32 %v388
    %vm395 = vweird.f32 %v389
    %vm396 = vmor %vm394, %vm395
    %v397 = vsel %vm396, %v389, %v393
    %v398 = vand.u32 2147483647, %v388
    %vm399 = vcmp.eq.f32.partialorder %v398, 8.507059e+37
    %v400 = vand.u32 %v388, 2147483648
    %v401 = vor.u32 1.1754944e-38, %v400
    %v402 = vsel %vm399, %v401, %v397
    %v403 = vmul.f32 1.0, %v402
    %v404 = vtanh.pop %v384
    %v405 = vmul.f32 %v403, %v327
    %407 = vrot.lane.b32.xlu0 %v404, 64
    %v408 = vpop.permute.xlu0 %407
    %v410 = vmul.f32 %v403, %v408
    %412 = vrot.lane.b32.xlu0 %v410, 32
    %v413 = vpop.permute.xlu0 %412
    %v415 = vadd.f32 %v405, %v413
    %v416 = vtanh.pop %v415
    %418 = vrot.lane.b32.xlu0 %v416, 64
    %v419 = vpop.permute.xlu0 %418
    %v421 = vmul.f32 %v403, %v419
    %423 = vrot.lane.b32.xlu0 %v421, 32
    %v424 = vpop.permute.xlu0 %423
    %vm426 = vcmask 257024
    %427 = vst.msk [vmem:[#allocation7] sm:$0xf] %vm426, %v424
    %429 = vrot.lane.b32.xlu0 %v415, 96
    %v430 = vpop.permute.xlu0 %429
    %432 = vst.msk [vmem:[#allocation8] sm:$0xf] %vm426, %v430
    // Predicated region
    $region34: #{_run_level.1} parent=1 // pred_check
      _
    $region35: #{_run_level.1} parent=1 // pred_check_branch
      %434 = sbr.rel (0) target = $region37
    $region36: #{_run_level.1} parent=1 // pred_region
      %436 = vsyncadd [#allocation4], 0
      %s438 = sshll.u32 [#allocation7], 4
      %s439 = int_to_ptr.vmem [resolvable:$true] %s438
      %s440 = sshll.u32 %s6, 4
      %s441 = int_to_ptr.hbm [resolvable:$true] %s440
      %443 = dma.vmem_to_hbm [thread:$0]  %s439, 64, %s441, [#allocation4]
    $region37: #{_run_level.1} parent=1 // pred_fallthru
      _
    // Predicated region
    $region38: #{_run_level.1} parent=1 // pred_check
      _
    $region39: #{_run_level.1} parent=1 // pred_check_branch
      %445 = sbr.rel (0) target = $region41
    $region40: #{_run_level.1} parent=1 // pred_region
      %447 = vsyncadd [#allocation9], 0
      %s449 = sshll.u32 [#allocation8], 4
      %s450 = int_to_ptr.vmem [resolvable:$true] %s449
      %s451 = sshll.u32 %s7, 4
      %s452 = int_to_ptr.hbm [resolvable:$true] %s451
      %454 = dma.vmem_to_hbm [thread:$0]  %s450, 64, %s452, [#allocation9]
    $region41: #{_run_level.1} parent=1 // pred_fallthru
      _
    // Predicated region
    $region42: #{_run_level.1} parent=1 // pred_check
      _
    $region43: #{_run_level.1} parent=1 // pred_check_branch
      %456 = sbr.rel (0) target = $region45
    $region44: #{_run_level.1} parent=1 // pred_region
      %458 = dma.done [#allocation4], 64
    $region45: #{_run_level.1} parent=1 // pred_fallthru
      _
    // Predicated region
    $region46: #{_run_level.1} parent=1 // pred_check
      _
    $region47: #{_run_level.1} parent=1 // pred_check_branch
      %460 = sbr.rel (0) target = $region49
    $region48: #{_run_level.1} parent=1 // pred_region
      %462 = dma.done [#allocation9], 64
    $region49: #{_run_level.1} parent=1 // pred_fallthru
      _
    %463 = vsyncpa [#allocation3], 1
    %464 = vsyncpa [#allocation4], 1
    %465 = vsyncpa [#allocation9], 1
    %466 = vsyncpa [#allocation5], 1

</llo_original>
